<compile_context>
chip_gen: v7x
topology: tpu7x:2x2x1
jax: 0.10.0
libtpu: 0.0.40
codegen_flags: <defaults>
</compile_context>

<pallas_src>
import math

import jax
import jax.numpy as jnp
from jax import lax
from jax.experimental import pallas as pl
from jax.experimental.pallas import tpu as pltpu

_LANE = 128
_DEFAULT_TN = 512
_DEFAULT_TK = 1024


def _round_up(n: int, m: int) -> int:
    return ((n + m - 1) // m) * m


def _sublane_multiple(dtype) -> int:
    # f32 -> 8 rows/vreg, bf16 -> 16, int8/fp8 -> 32 (sub-32-bit packs sublanes).
    itemsize = jnp.dtype(dtype).itemsize
    return 8 * max(1, 4 // itemsize)


def _vmem_budget_bytes() -> int:
    """~3/4 of physical VMEM (v5e/v6e: 128MiB->96MiB, v7x: 64MiB->48MiB)."""
    cap = None
    try:
        info = pltpu.get_tpu_info()
        cap = getattr(info, "vmem_capacity_bytes", None)
    except Exception:  # pragma: no cover - query unavailable
        cap = None
    if not cap:
        cap = 64 * 1024 * 1024  # conservative fallback (covers v7x)
    return int(cap) * 3 // 4


def _resolve_nk_tiles(N: int, K: int, tn=None, tk=None):
    tn = _DEFAULT_TN if tn is None else tn
    tk = _DEFAULT_TK if tk is None else tk
    tn = min(tn, _round_up(N, _LANE))   # lane-dense output columns
    tk = min(tk, _round_up(K, _LANE))   # lane-aligned contraction chunks
    return tn, tk


# ---------------------------------------------------------------- kernels --
def _matmul_step(x_ref, w_ref, acc_ref):
    @pl.when(pl.program_id(2) == 0)
    def _():
        acc_ref[...] = jnp.zeros_like(acc_ref)

    # x @ w.T on the MXU: contract the last dim of the (tm, tk) activation
    # tile with the last dim of the (tn, tk) weight tile (PyTorch (out, in)
    # layout). The weight becomes the transposed stationary MXU operand; no
    # XLU transpose is emitted for this form.
    acc_ref[...] += lax.dot_general(
        x_ref[...],
        w_ref[...],
        dimension_numbers=(((1,), (1,)), ((), ())),
        preferred_element_type=jnp.float32,
    )


def _linear_kernel_bias(x_ref, w_ref, b_ref, o_ref, acc_ref):
    _matmul_step(x_ref, w_ref, acc_ref)

    @pl.when(pl.program_id(2) == pl.num_programs(2) - 1)
    def _():
        o_ref[...] = (acc_ref[...] + b_ref[...]).astype(o_ref.dtype)


def _linear_kernel_nobias(x_ref, w_ref, o_ref, acc_ref):
    _matmul_step(x_ref, w_ref, acc_ref)

    @pl.when(pl.program_id(2) == pl.num_programs(2) - 1)
    def _():
        o_ref[...] = acc_ref[...].astype(o_ref.dtype)


# ---------------------------------------------------------------- wrapper --
def pad_weight_for_verified_linear(weight, *, tn=None, tk=None):
    """One-time pad of the (out, in) weight to kernel tile multiples.

    Do this at parameter-init time for ragged layers so the forward path never
    re-pads the O(N*K) weight per call. Pass the result to `verified_linear`
    together with `out_features=<logical out_features>`.
    """
    N, K = int(weight.shape[0]), int(weight.shape[1])
    tn, tk = _resolve_nk_tiles(N, K, tn, tk)
    Np, Kp = _round_up(N, tn), _round_up(K, tk)
    if (Np, Kp) == (N, K):
        return weight
    return jnp.pad(weight, ((0, Np - N), (0, Kp - K)))


def verified_linear(x, weight, bias=None, *, out_features=None,
                    tm=None, tn=None, tk=None, operand_dtype=None):
    """F.linear(x, weight, bias) = x @ weight.T + bias via a Pallas TPU kernel.

    x:            (..., in_features)
    weight:       (out_features, in_features) PyTorch layout, or the same
                  weight pre-padded to tile multiples via
                  pad_weight_for_verified_linear (then pass out_features=).
    bias:         (out_features,) or None
    operand_dtype: optional MXU operand dtype (e.g. jnp.bfloat16); the
                  accumulator stays f32 and the output keeps x.dtype.
    """
    K = int(x.shape[-1])
    N = int(out_features) if out_features is not None else int(weight.shape[0])
    lead_shape = x.shape[:-1]
    M = int(math.prod(lead_shape)) if lead_shape else 1

    out_dtype = x.dtype
    if operand_dtype is None:
        # Cast both operands to a single dtype so the MXU path (and the cost
        # estimate) are well defined even for mixed-dtype inputs.
        operand_dtype = jnp.result_type(x.dtype, weight.dtype)
    operand_dtype = jnp.dtype(operand_dtype)
    op_itemsize = operand_dtype.itemsize
    out_itemsize = jnp.dtype(out_dtype).itemsize

    # ---- tile selection ----
    tn, tk = _resolve_nk_tiles(N, K, tn, tk)
    Np, Kp = _round_up(N, tn), _round_up(K, tk)

    budget = _vmem_budget_bytes()
    sub = _sublane_multiple(operand_dtype)
    if tm is None:
        # Larger M tile where VMEM is plentiful (v5e/v6e), smaller on v7x.
        tm = 1024 if budget >= 80 * 1024 * 1024 else 512
    tm = min(tm, _round_up(M, sub))

    def _vmem_needed(tm_):
        return (2 * (tm_ * tk + tn * tk) * op_itemsize   # double-buffered x, w
                + 2 * tm_ * tn * out_itemsize            # double-buffered out
                + tm_ * tn * 4                           # f32 accumulator
                + 2 * tn * 4)                            # bias tile

    while tm > sub and _vmem_needed(tm) > budget:
        tm = max(sub, _round_up(tm // 2, sub))
    Mp = _round_up(M, tm)

    # ---- operand prep ----
    # x: cheap O(M*K) per-call pad + cast.
    x2d = x.reshape(M, K).astype(operand_dtype)
    if (Mp, Kp) != (M, K):
        x2d = jnp.pad(x2d, ((0, Mp - M), (0, Kp - K)))

    # weight: accept an already tile-padded (Np, Kp) weight so ragged hot
    # paths never re-pad the O(N*K) weight; per-call pad is the fallback.
    w_shape = tuple(int(s) for s in weight.shape)
    if w_shape == (Np, Kp):
        w = weight
    elif w_shape == (N, K):
        w = weight
        if (Np, Kp) != (N, K):
            w = jnp.pad(w, ((0, Np - N), (0, Kp - K)))
    else:
        raise ValueError(
            f"weight shape {w_shape} is neither (out, in)=({N}, {K}) nor the "
            f"tile-padded ({Np}, {Kp}); use pad_weight_for_verified_linear.")
    w = w.astype(operand_dtype)

    grid = (Mp // tm, Np // tn, Kp // tk)
    # TODO(synk): on v7x (2 TensorCores) pick tiles so grid[0]*grid[1] is even
    # to avoid one idle core on tiny parallel grids.

    cost = pl.CostEstimate(
        flops=2 * Mp * Np * Kp,
        bytes_accessed=(op_itemsize * ((Np // tn) * Mp * Kp        # x streamed per N tile
                                       + (Mp // tm) * Np * Kp)     # w streamed per M tile
                        + out_itemsize * Mp * Np
                        + 4 * Np * (Mp // tm)),                    # bias (if any)
        transcendentals=0,
    )
    compiler_params = pltpu.CompilerParams(
        dimension_semantics=("parallel", "parallel", "arbitrary"),
        vmem_limit_bytes=int(min(budget,
                                 max(32 * 1024 * 1024, 2 * _vmem_needed(tm)))),
    )

    x_spec = pl.BlockSpec((tm, tk), lambda i, j, k: (i, k))
    w_spec = pl.BlockSpec((tn, tk), lambda i, j, k: (j, k))
    o_spec = pl.BlockSpec((tm, tn), lambda i, j, k: (i, j))
    scratch = [pltpu.VMEM((tm, tn), jnp.float32)]
    out_shape = jax.ShapeDtypeStruct((Mp, Np), out_dtype)

    if bias is None:
        out = pl.pallas_call(
            _linear_kernel_nobias,
            out_shape=out_shape,
            grid_spec=pltpu.PrefetchScalarGridSpec(
                num_scalar_prefetch=0,
                grid=grid,
                in_specs=[x_spec, w_spec],
                out_specs=o_spec,
                scratch_shapes=scratch),
            compiler_params=compiler_params,
            cost_estimate=cost,
        )(x2d, w)
    else:
        b2d = bias.astype(jnp.float32).reshape(1, N)
        if Np != N:
            b2d = jnp.pad(b2d, ((0, 0), (0, Np - N)))
        b_spec = pl.BlockSpec((1, tn), lambda i, j, k: (0, j))
        out = pl.pallas_call(
            _linear_kernel_bias,
            out_shape=out_shape,
            grid_spec=pltpu.PrefetchScalarGridSpec(
                num_scalar_prefetch=0,
                grid=grid,
                in_specs=[x_spec, w_spec, b_spec],
                out_specs=o_spec,
                scratch_shapes=scratch),
            compiler_params=compiler_params,
            cost_estimate=cost,
        )(x2d, w, b2d)

    if (Mp, Np) != (M, N):
        out = out[:M, :N]
    return out.reshape(*lead_shape, N)


def init_verified_linear_params(key, in_features, out_features, dtype=jnp.float32):
    """Deterministic re-implementation of VerifiedLinear.reset_parameters()."""
    kw, kb = jax.random.split(key)
    # kaiming_uniform_(a=sqrt(5)) -> bound = sqrt(6/((1+a^2)*fan_in)) = 1/sqrt(fan_in)
    fan_in = in_features
    bound = 1.0 / math.sqrt(fan_in)
    weight = jax.random.uniform(
        kw, (out_features, in_features), dtype, minval=-bound, maxval=bound)
    bias = jax.random.uniform(
        kb, (out_features,), dtype, minval=-bound, maxval=bound)
    return weight, bias


if __name__ == "__main__":
    key = jax.random.PRNGKey(0)
    k_x, k_p, k_x2, k_p2 = jax.random.split(key, 4)

    # 1) Small aligned-ish shape, f32 operands, with bias.
    batch, seq, in_features, out_features = 2, 8, 32, 64
    x = jax.random.normal(k_x, (batch, seq, in_features), jnp.float32)
    weight, bias = init_verified_linear_params(k_p, in_features, out_features)
    y = jax.block_until_ready(verified_linear(x, weight, bias))
    y_ref = x @ weight.T + bias
    assert y.shape == (batch, seq, out_features)
    assert jnp.allclose(y, y_ref, atol=2e-5, rtol=1e-5)

    # 2) Ragged shapes: pre-padded weight (no per-call O(N*K) pad) with bias,
    #    plus the bias=None kernel variant with the raw weight.
    x2 = jax.random.normal(k_x2, (3, 7, 50), jnp.float32)
    w2, b2 = init_verified_linear_params(k_p2, 50, 100)
    w2_padded = pad_weight_for_verified_linear(w2)
    y2 = jax.block_until_ready(
        verified_linear(x2, w2_padded, b2, out_features=100))
    y2_ref = x2 @ w2.T + b2
    assert y2.shape == (3, 7, 100)
    assert jnp.allclose(y2, y2_ref, atol=2e-5, rtol=1e-5)

    y2n = jax.block_until_ready(verified_linear(x2, w2, None))
    assert jnp.allclose(y2n, x2 @ w2.T, atol=2e-5, rtol=1e-5)

    # 3) bf16 MXU operands with f32 accumulation (perf path), loose tolerance.
    y3 = jax.block_until_ready(
        verified_linear(x, weight, bias, operand_dtype=jnp.bfloat16))
    assert jnp.allclose(y3, y_ref, atol=5e-2, rtol=5e-2)

    print("KERNEL_OK")
</pallas_src>

<mosaic_0001>
module attributes {stable_mosaic.version = 11 : i64} {
  func.func @_linear_kernel_bias(%arg0: i32, %arg1: i32, %arg2: i32, %arg3: memref<16x128xf32, #tpu.memory_space<vmem>>, %arg4: memref<128x128xf32, #tpu.memory_space<vmem>>, %arg5: memref<1x128xf32, #tpu.memory_space<vmem>>, %arg6: memref<16x128xf32, #tpu.memory_space<vmem>>, %arg7: memref<16x128xf32, #tpu.memory_space<vmem>>) attributes {dimension_semantics = [#tpu.dimension_semantics<parallel>, #tpu.dimension_semantics<parallel>, #tpu.dimension_semantics<arbitrary>], iteration_bounds = array<i64: 1, 1, 1>, scalar_prefetch = 0 : i64, scratch_operands = 1 : i64, tpu.core_type = #tpu.core_type<tc>, window_params = [{transform_indices = @transform_0, window_bounds = array<i64: 16, 128>}, {transform_indices = @transform_1, window_bounds = array<i64: 128, 128>}, {transform_indices = @transform_2, window_bounds = array<i64: 1, 128>}, {transform_indices = @transform_3, window_bounds = array<i64: 16, 128>}]} {
    %c0_i32 = arith.constant 0 : i32
    %0 = arith.cmpi eq, %arg2, %c0_i32 : i32
    %1 = arith.extui %0 : i1 to i32
    %c0_i32_0 = arith.constant 0 : i32
    %2 = arith.cmpi ne, %1, %c0_i32_0 : i32
    scf.if %2 {
      %cst_10 = arith.constant 0.000000e+00 : f32
      %12 = vector.broadcast %cst_10 : f32 to vector<16x128xf32>
      %c0_11 = arith.constant 0 : index
      %c0_12 = arith.constant 0 : index
      %13 = vector.load %arg7[%c0_11, %c0_12] : memref<16x128xf32, #tpu.memory_space<vmem>>, vector<16x128xf32>
      tpu.vector_store %arg7[%c0_11, %c0_12], %12 {strides = array<i32>} : memref<16x128xf32, #tpu.memory_space<vmem>>, vector<16x128xf32>,
    } else {
    }
    %c0 = arith.constant 0 : index
    %c0_1 = arith.constant 0 : index
    %3 = vector.load %arg7[%c0, %c0_1] : memref<16x128xf32, #tpu.memory_space<vmem>>, vector<16x128xf32>
    %c0_2 = arith.constant 0 : index
    %c0_3 = arith.constant 0 : index
    %4 = vector.load %arg3[%c0_2, %c0_3] : memref<16x128xf32, #tpu.memory_space<vmem>>, vector<16x128xf32>
    %c0_4 = arith.constant 0 : index
    %c0_5 = arith.constant 0 : index
    %5 = vector.load %arg4[%c0_4, %c0_5] : memref<128x128xf32, #tpu.memory_space<vmem>>, vector<128x128xf32>
    %cst = arith.constant dense<0.000000e+00> : vector<16x128xf32>
    %6 = tpu.matmul %4, %5, %cst {dimension_numbers = #tpu.dot_dimension_numbers<[1], [1], [0], [0], [0, 0, 1, 0], [], []>} : vector<16x128xf32>, vector<128x128xf32>, vector<16x128xf32> -> vector<16x128xf32>
    %7 = arith.addf %3, %6 : vector<16x128xf32>
    %c0_6 = arith.constant 0 : index
    %c0_7 = arith.constant 0 : index
    %8 = vector.load %arg7[%c0_6, %c0_7] : memref<16x128xf32, #tpu.memory_space<vmem>>, vector<16x128xf32>
    tpu.vector_store %arg7[%c0_6, %c0_7], %7 {strides = array<i32>} : memref<16x128xf32, #tpu.memory_space<vmem>>, vector<16x128xf32>,
    %c0_i32_8 = arith.constant 0 : i32
    %9 = arith.cmpi eq, %arg2, %c0_i32_8 : i32
    %10 = arith.extui %9 : i1 to i32
    %c0_i32_9 = arith.constant 0 : i32
    %11 = arith.cmpi ne, %10, %c0_i32_9 : i32
    scf.if %11 {
      %c0_10 = arith.constant 0 : index
      %c0_11 = arith.constant 0 : index
      %12 = vector.load %arg7[%c0_10, %c0_11] : memref<16x128xf32, #tpu.memory_space<vmem>>, vector<16x128xf32>
      %c0_12 = arith.constant 0 : index
      %c0_13 = arith.constant 0 : index
      %13 = vector.load %arg5[%c0_12, %c0_13] : memref<1x128xf32, #tpu.memory_space<vmem>>, vector<1x128xf32>
      %14 = vector.broadcast %13 : vector<1x128xf32> to vector<16x128xf32>
      %15 = arith.addf %12, %14 : vector<16x128xf32>
      %c0_14 = arith.constant 0 : index
      %c0_15 = arith.constant 0 : index
      %16 = vector.load %arg6[%c0_14, %c0_15] : memref<16x128xf32, #tpu.memory_space<vmem>>, vector<16x128xf32>
      tpu.vector_store %arg6[%c0_14, %c0_15], %15 {strides = array<i32>} : memref<16x128xf32, #tpu.memory_space<vmem>>, vector<16x128xf32>,
    } else {
    }
    return
  }
  func.func @transform_0(%arg0: i32, %arg1: i32, %arg2: i32) -> (i32, i32) {
    %c0_i32 = arith.constant 0 : i32
    return %arg0, %arg2 : i32, i32
  }
  func.func @transform_1(%arg0: i32, %arg1: i32, %arg2: i32) -> (i32, i32) {
    %c0_i32 = arith.constant 0 : i32
    return %arg1, %arg2 : i32, i32
  }
  func.func @transform_2(%arg0: i32, %arg1: i32, %arg2: i32) -> (i32, i32) {
    %c0_i32 = arith.constant 0 : i32
    %c0_i32_0 = arith.constant 0 : i32
    return %c0_i32, %arg1 : i32, i32
  }
  func.func @transform_3(%arg0: i32, %arg1: i32, %arg2: i32) -> (i32, i32) {
    %c0_i32 = arith.constant 0 : i32
    return %arg0, %arg1 : i32, i32
  }
}

</mosaic_0001>

<llo_original>
// kernel: tpu_custom_call.1
$region0: #{tpu_custom_call.1}
  #allocation0 [shape = 'u32[]', space=smem, size = 0x4, offset = 0x4, fixed_abs, tag = 'smem constant byte address 0x4 - core index']
  #allocation1 [shape = 'u32[144,128]{1,0:T(1,128)}', space=vmem, size = 0x12000, scoped, tag = 'internal scratch']
  #allocation2 [shape = 'f32[16,128]{1,0:T(8,128)}', space=vmem, size = 0x2000, scoped, tag = 'scratch operand']
  %s0 = inlined_call_operand.hbm [shape: f32[16,128], index: 0, kind: input, shape index: {}]
  %s1 = inlined_call_operand.hbm [shape: f32[128,128], index: 1, kind: input, shape index: {}]
  %s2 = inlined_call_operand.vmem [shape: f32[1,128], index: 2, kind: input, shape index: {}]
  %s3 = inlined_call_operand.hbm [shape: f32[16,128], index: 3, kind: output, shape index: {}]
  %s4 = sld [smem:[#allocation0]]
  $region38: #{tpu_custom_call.1} parent=0
    _
  %s6 = ssub.s32 1, %s4
  %s7 = scalar_select 0, %s6, %s4
  $region1: #{tpu_custom_call.1} parent=0
    #allocation3 [shape = 'u8[8192]{0}', space=vmem, size = 0x2000, scoped, tag = 'input window, operand 0, single buffered']
    #allocation4 [shape = 's32[1]{0}', space=sflag, size = 0x4, scoped, tag = 'scoped memory for tpu_custom_call.1']
    #allocation5 [shape = 's32[1]{0}', space=sflag, size = 0x4, scoped, tag = 'scoped memory for tpu_custom_call.1']
    #allocation6 [shape = 'u8[65536]{0}', space=vmem, size = 0x10000, scoped, tag = 'input window, operand 1, single buffered']
    #allocation7 [shape = 's32[1]{0}', space=sflag, size = 0x4, scoped, tag = 'scoped memory for tpu_custom_call.1']
    #allocation8 [shape = 'u8[8192]{0}', space=vmem, size = 0x2000, scoped, tag = 'output window, operand 0, single buffered']
    %8 = vsyncpa [#allocation4], 0
    %9 = vsyncpa [#allocation7], 0
    %10 = vsyncpa [#allocation5], 0
    // Predicated region
    $region2: #{tpu_custom_call.1} parent=1 // pred_check
      _
    $region3: #{tpu_custom_call.1} parent=1 // pred_check_branch
      %12 = sbr.rel (0) target = $region5
    $region4: #{tpu_custom_call.1} parent=1 // pred_region
      %s14 = ssub.s32 256, 256
      %15 = vsyncadd [#allocation4], %s14
      %s16 = sshll.u32 [#allocation3], 4
      %s17 = int_to_ptr.vmem [resolvable:$true] %s16
      %22 = dma.hbm_to_vmem [thread:$0]  %s0, 256, %s17, [#allocation4], 128, 128, 8
    $region5: #{tpu_custom_call.1} parent=1 // pred_fallthru
      _
    // Predicated region
    $region6: #{tpu_custom_call.1} parent=1 // pred_check
      _
    $region7: #{tpu_custom_call.1} parent=1 // pred_check_branch
      %24 = sbr.rel (0) target = $region9
    $region8: #{tpu_custom_call.1} parent=1 // pred_region
      %s26 = ssub.s32 2048, 2048
      %27 = vsyncadd [#allocation7], %s26
      %s28 = sshll.u32 [#allocation6], 4
      %s29 = int_to_ptr.vmem [resolvable:$true] %s28
      %34 = dma.hbm_to_vmem [thread:$0]  %s1, 2048, %s29, [#allocation7], 128, 128, 8
    $region9: #{tpu_custom_call.1} parent=1 // pred_fallthru
      _
    // Predicated region
    $region10: #{tpu_custom_call.1} parent=1 // pred_check
      _
    $region11: #{tpu_custom_call.1} parent=1 // pred_check_branch
      %36 = sbr.rel (0) target = $region13
    $region12: #{tpu_custom_call.1} parent=1 // pred_region
      _
    $region13: #{tpu_custom_call.1} parent=1 // pred_fallthru
      _
    // Predicated region
    $region14: #{tpu_custom_call.1} parent=1 // pred_check
      _
    $region15: #{tpu_custom_call.1} parent=1 // pred_check_branch
      %38 = sbr.rel (0) target = $region17
    $region16: #{tpu_custom_call.1} parent=1 // pred_region
      %39 = dma.done [#allocation4], 256
    $region17: #{tpu_custom_call.1} parent=1 // pred_fallthru
      _
    // Predicated region
    $region18: #{tpu_custom_call.1} parent=1 // pred_check
      _
    $region19: #{tpu_custom_call.1} parent=1 // pred_check_branch
      %41 = sbr.rel (0) target = $region21
    $region20: #{tpu_custom_call.1} parent=1 // pred_region
      %42 = dma.done [#allocation7], 2048
    $region21: #{tpu_custom_call.1} parent=1 // pred_fallthru
      _
    %p43 = scmp.eq.s32.totalorder 0, 0
    // Predicated region
    $region22: #{tpu_custom_call.1} parent=1 // pred_check
      %p44 = pneg %p43
    $region23: #{tpu_custom_call.1} parent=1 // pred_check_branch
      %46 = sbr.rel (%p44) target = $region25
    $region24: #{tpu_custom_call.1} parent=1 // pred_region
      %47 = vst [vmem:[#allocation2] sm:$0xff] 0.0
      %48 = vst [vmem:[#allocation2 + $0x8] sm:$0xff] 0.0
    $region25: #{tpu_custom_call.1} parent=1 // pred_fallthru
      _
    %v49 = vld [vmem:[#allocation2] sm:$0xff]
    %v50 = vld [vmem:[#allocation2 + $0x8] sm:$0xff]
    %v51 = vld [vmem:[#allocation3] sm:$0xff]
    %v52 = vld [vmem:[#allocation3 + $0x8] sm:$0xff]
    %v53 = vld [vmem:[#allocation6] sm:$0xff]
    %v54 = vld [vmem:[#allocation6 + $0x8] sm:$0xff]
    %v55 = vld [vmem:[#allocation6 + $0x10] sm:$0xff]
    %v56 = vld [vmem:[#allocation6 + $0x18] sm:$0xff]
    %v57 = vld [vmem:[#allocation6 + $0x20] sm:$0xff]
    %v58 = vld [vmem:[#allocation6 + $0x28] sm:$0xff]
    %v59 = vld [vmem:[#allocation6 + $0x30] sm:$0xff]
    %v60 = vld [vmem:[#allocation6 + $0x38] sm:$0xff]
    %v61 = vld [vmem:[#allocation6 + $0x40] sm:$0xff]
    %v62 = vld [vmem:[#allocation6 + $0x48] sm:$0xff]
    %v63 = vld [vmem:[#allocation6 + $0x50] sm:$0xff]
    %v64 = vld [vmem:[#allocation6 + $0x58] sm:$0xff]
    %v65 = vld [vmem:[#allocation6 + $0x60] sm:$0xff]
    %v66 = vld [vmem:[#allocation6 + $0x68] sm:$0xff]
    %v67 = vld [vmem:[#allocation6 + $0x70] sm:$0xff]
    %v68 = vld [vmem:[#allocation6 + $0x78] sm:$0xff]
    %69 = vmatprep.subr.mxu0 0.0
    %70 = vmatpush1.xpose.msra.mxu0 %v53
    %71 = vmatprep.subr.mxu0 0.0
    %72 = vmatpush1.xpose.msra.mxu0 %v54
    %73 = vmatprep.subr.mxu0 0.0
    %74 = vmatpush1.xpose.msra.mxu0 %v55
    %75 = vmatprep.subr.mxu0 0.0
    %76 = vmatpush1.xpose.msra.mxu0 %v56
    %77 = vmatprep.subr.mxu0 0.0
    %78 = vmatpush1.xpose.msra.mxu0 %v57
    %79 = vmatprep.subr.mxu0 0.0
    %80 = vmatpush1.xpose.msra.mxu0 %v58
    %81 = vmatprep.subr.mxu0 0.0
    %82 = vmatpush1.xpose.msra.mxu0 %v59
    %83 = vmatprep.subr.mxu0 0.0
    %84 = vmatpush1.xpose.msra.mxu0 %v60
    %85 = vmatprep.subr.mxu0 0.0
    %86 = vmatpush1.xpose.msra.mxu0 %v61
    %87 = vmatprep.subr.mxu0 0.0
    %88 = vmatpush1.xpose.msra.mxu0 %v62
    %89 = vmatprep.subr.mxu0 0.0
    %90 = vmatpush1.xpose.msra.mxu0 %v63
    %91 = vmatprep.subr.mxu0 0.0
    %92 = vmatpush1.xpose.msra.mxu0 %v64
    %93 = vmatprep.subr.mxu0 0.0
    %94 = vmatpush1.xpose.msra.mxu0 %v65
    %95 = vmatprep.subr.mxu0 0.0
    %96 = vmatpush1.xpose.msra.mxu0 %v66
    %97 = vmatprep.subr.mxu0 0.0
    %98 = vmatpush1.xpose.msra.mxu0 %v67
    %99 = vmatprep.subr.mxu0 0.0
    %100 = vmatpush1.xpose.msra.mxu0 %v68
    %101 = vmatprep.subr.mxu0 0.0
    %102 = vmatpush1.xpose.msra.mxu0 0.0
    %103 = vmatprep.subr.mxu0 0.0
    %104 = vmatpush1.xpose.msra.mxu0 0.0
    %105 = vmatprep.subr.mxu0 0.0
    %106 = vmatpush1.xpose.msra.mxu0 0.0
    %107 = vmatprep.subr.mxu0 0.0
    %108 = vmatpush1.xpose.msra.mxu0 0.0
    %109 = vmatprep.subr.mxu0 0.0
    %110 = vmatpush1.xpose.msra.mxu0 0.0
    %111 = vmatprep.subr.mxu0 0.0
    %112 = vmatpush1.xpose.msra.mxu0 0.0
    %113 = vmatprep.subr.mxu0 0.0
    %114 = vmatpush1.xpose.msra.mxu0 0.0
    %115 = vmatprep.subr.mxu0 0.0
    %116 = vmatpush1.xpose.msra.mxu0 0.0
    %117 = vmatprep.subr.mxu0 0.0
    %118 = vmatpush1.xpose.msra.mxu0 0.0
    %119 = vmatprep.subr.mxu0 0.0
    %120 = vmatpush1.xpose.msra.mxu0 0.0
    %121 = vmatprep.subr.mxu0 0.0
    %122 = vmatpush1.xpose.msra.mxu0 0.0
    %123 = vmatprep.subr.mxu0 0.0
    %124 = vmatpush1.xpose.msra.mxu0 0.0
    %125 = vmatprep.subr.mxu0 0.0
    %126 = vmatpush1.xpose.msra.mxu0 0.0
    %127 = vmatprep.subr.mxu0 0.0
    %128 = vmatpush1.xpose.msra.mxu0 0.0
    %129 = vmatprep.subr.mxu0 0.0
    %130 = vmatpush1.xpose.msra.mxu0 0.0
    %131 = vmatprep.subr.mxu0 0.0
    %132 = vmatpush1.xpose.msra.mxu0 0.0
    %133 = vmatprep.mubr.f32.mxu0 0.0
    %134 = vmatmul.mubr.f32.gmra.mrb[0].mxu0 %v51
    %v135 = vpop.f32.mrb[0].mxu0
    %v136 = vadd.f32 0.0, %v135
    %v137 = vpop.f32.mrb[0].mxu0
    %138 = vmatprep.mubr.f32.mxu0 0.0
    %139 = vmatmul.mubr.f32.gmra.mrb[0].mxu0 %v52
    %v140 = vpop.f32.mrb[0].mxu0
    %v141 = vadd.f32 0.0, %v140
    %v142 = vpop.f32.mrb[0].mxu0
    %143 = vdwg.mxu0
    %v144 = vadd.f32 %v49, %v136
    %v145 = vadd.f32 %v50, %v141
    %146 = vst [vmem:[#allocation2] sm:$0xff] %v144
    %147 = vst [vmem:[#allocation2 + $0x8] sm:$0xff] %v145
    // Predicated region
    $region26: #{tpu_custom_call.1} parent=1 // pred_check
      %p148 = pneg %p43
    $region27: #{tpu_custom_call.1} parent=1 // pred_check_branch
      %150 = sbr.rel (%p148) target = $region29
    $region28: #{tpu_custom_call.1} parent=1 // pred_region
      %v151 = vld [vmem:[#allocation2] sm:$0xff]
      %v152 = vld [vmem:[#allocation2 + $0x8] sm:$0xff]
      %v153 = vld [vmem:[%s2] sm:$0x1]
      %v155 = vlaneseq
      %v156 = vshrl.u32 %v155, 7
      %v157 = vsub.s32 0, %v156
      %v158 = vrot.slane %v153, %v157
      %v160 = vadd.f32 %v151, %v158
      %v161 = vadd.f32 %v152, %v158
      %162 = vst [vmem:[#allocation8] sm:$0xff] %v160
      %163 = vst [vmem:[#allocation8 + $0x8] sm:$0xff] %v161
    $region29: #{tpu_custom_call.1} parent=1 // pred_fallthru
      _
    // Predicated region
    $region30: #{tpu_custom_call.1} parent=1 // pred_check
      _
    $region31: #{tpu_custom_call.1} parent=1 // pred_check_branch
      %165 = sbr.rel (0) target = $region33
    $region32: #{tpu_custom_call.1} parent=1 // pred_region
      %s167 = ssub.s32 256, 256
      %168 = vsyncadd [#allocation5], %s167
      %s169 = sshll.u32 [#allocation8], 4
      %s170 = int_to_ptr.vmem [resolvable:$true] %s169
      %175 = dma.vmem_to_hbm [thread:$0]  %s170, 256, %s3, [#allocation5], 128, 128, 8
    $region33: #{tpu_custom_call.1} parent=1 // pred_fallthru
      _
    // Predicated region
    $region34: #{tpu_custom_call.1} parent=1 // pred_check
      _
    $region35: #{tpu_custom_call.1} parent=1 // pred_check_branch
      %177 = sbr.rel (0) target = $region37
    $region36: #{tpu_custom_call.1} parent=1 // pred_region
      %178 = dma.done [#allocation5], 256
    $region37: #{tpu_custom_call.1} parent=1 // pred_fallthru
      _
    %179 = vsyncpa [#allocation4], 1
    %180 = vsyncpa [#allocation7], 1
    %181 = vsyncpa [#allocation5], 1

</llo_original>
